<compile_context>
chip_gen: v6e
topology: v6e:2x2x1
jax: 0.10.0
libtpu: 0.0.40
codegen_flags: <defaults>
</compile_context>

<pallas_src>
import functools
import math

import jax
import jax.numpy as jnp
from jax.experimental import pallas as pl
from jax.experimental.pallas import tpu as pltpu


MATMUL_DTYPE = jnp.bfloat16   # MXU inputs; accumulation stays f32.


# -----------------------------------------------------------------------------
# Hardware-aware sizing helpers
# -----------------------------------------------------------------------------
@functools.lru_cache(maxsize=None)
def _vmem_capacity_bytes():
    try:
        return int(pltpu.get_tpu_info().vmem_capacity_bytes)
    except Exception:
        return 64 * 1024 * 1024          # conservative (v7x-sized) default


def _vmem_limit_bytes():
    cap = _vmem_capacity_bytes()
    return max(32 * 1024 * 1024, min(cap * 3 // 4, 96 * 1024 * 1024))


def _row_tile_cap():
    cap = _vmem_capacity_bytes()
    if cap >= 100 * 1024 * 1024:         # v5e / v6e: 128 MiB VMEM
        return 1024
    if cap >= 48 * 1024 * 1024:          # v7x: 64 MiB VMEM
        return 512
    return 256


def _row_plan(M):
    """Return (row_tile, padded_M).  Pads M up instead of one giant tile."""
    cap = _row_tile_cap()
    if M <= cap:
        return M, M
    for t in range(cap, 7, -8):
        if M % t == 0:
            return t, M
    padded = ((M + cap - 1) // cap) * cap
    return cap, padded


@functools.lru_cache(maxsize=None)
def _buffered1_supported():
    """Probe whether pipeline_mode=pl.Buffered(1) lowers/runs on this install."""
    try:
        def _k(x_ref, w_ref, o_ref):
            o_ref[...] = x_ref[...] + w_ref[...]

        x = jnp.zeros((16, 128), jnp.float32)
        w = jnp.zeros((8, 128), jnp.float32)
        y = pl.pallas_call(
            _k,
            out_shape=jax.ShapeDtypeStruct((16, 128), jnp.float32),
            grid=(2,),
            in_specs=[pl.BlockSpec((8, 128), lambda i: (i, 0)),
                      pl.BlockSpec((8, 128), lambda i: (0, 0),
                                   pipeline_mode=pl.Buffered(1))],
            out_specs=pl.BlockSpec((8, 128), lambda i: (i, 0)),
        )(x, w)
        jax.block_until_ready(y)
        return True
    except Exception:
        return False


def _const_spec(shape):
    """BlockSpec for a grid-invariant operand (single-buffered if supported)."""
    idx = lambda *_: (0,) * len(shape)
    if _buffered1_supported():
        return pl.BlockSpec(shape, idx, pipeline_mode=pl.Buffered(1))
    return pl.BlockSpec(shape, idx)


# -----------------------------------------------------------------------------
# In-kernel LayerNorm epilogue (one-pass statistics: var = E[x^2] - mu^2)
# -----------------------------------------------------------------------------
def _layernorm_f32(y, g, b, eps):
    mu = jnp.mean(y, axis=-1, keepdims=True)
    var = jnp.mean(y * y, axis=-1, keepdims=True) - mu * mu
    var = jnp.maximum(var, 0.0)
    return (y - mu) * jax.lax.rsqrt(var + eps) * g + b


# -----------------------------------------------------------------------------
# Standalone LayerNorm kernel (embedding LayerNorm only)
# -----------------------------------------------------------------------------
def _layernorm_kernel(x_ref, g_ref, b_ref, o_ref, *, eps):
    x = x_ref[...].astype(jnp.float32)
    o_ref[...] = _layernorm_f32(x, g_ref[...], b_ref[...], eps).astype(o_ref.dtype)


def layernorm(x, gamma, beta, *, eps, out_dtype):
    M, H = x.shape
    tm, pM = _row_plan(M)
    xp = x if pM == M else jnp.pad(x, ((0, pM - M), (0, 0)))
    out = pl.pallas_call(
        functools.partial(_layernorm_kernel, eps=eps),
        out_shape=jax.ShapeDtypeStruct((pM, H), out_dtype),
        grid=(pM // tm,),
        in_specs=[
            pl.BlockSpec((tm, H), lambda i: (i, 0)),
            _const_spec((1, H)),
            _const_spec((1, H)),
        ],
        out_specs=pl.BlockSpec((tm, H), lambda i: (i, 0)),
        compiler_params=pltpu.CompilerParams(
            dimension_semantics=("parallel",),
            vmem_limit_bytes=_vmem_limit_bytes()),
    )(xp, gamma.reshape(1, H), beta.reshape(1, H))
    return out if pM == M else out[:M]


# -----------------------------------------------------------------------------
# Fused attention block: QKV proj + MHA + single output proj + residual + LN1
# -----------------------------------------------------------------------------
def _attn_block_kernel(x_ref, mask_ref, wqkv_ref, bqkv_ref, wo_ref, bo_ref,
                       g_ref, b_ref, o_ref, *, n_heads, eps):
    x = x_ref[0]                                            # (S, H) bf16
    S, H = x.shape
    dh = H // n_heads

    # Single fused QKV projection; 1/sqrt(dh) is pre-folded into the q columns
    # of wqkv/bqkv, and the (S, 3H) activations are cast to bf16 exactly once.
    qkv = (jnp.dot(x, wqkv_ref[...], preferred_element_type=jnp.float32)
           + bqkv_ref[...]).astype(MATMUL_DTYPE)            # (S, 3H) bf16
    mask = mask_ref[0]                                      # (1, S) additive f32

    # Per-head attention.  Head contexts are assembled into one (S, H) bf16
    # matrix so the output projection is a single K=H MXU matmul (no per-head
    # K=dh matmuls and no per-head f32 accumulation).
    # TODO(synk): for very long S / v7x, split the q axis flash-style into an
    # extra parallel grid dimension instead of one full-sequence tile per batch.
    ctx_heads = []
    for h in range(n_heads):
        lo = h * dh
        qh = qkv[:, lo:lo + dh]
        kh = qkv[:, H + lo:H + lo + dh]
        vh = qkv[:, 2 * H + lo:2 * H + lo + dh]
        # q . k^T via dot_general contracting dh (no explicit transpose).
        s = jax.lax.dot_general(qh, kh, (((1,), (1,)), ((), ())),
                                preferred_element_type=jnp.float32)
        s = s + mask                                        # (S, S) f32
        s = s - jnp.max(s, axis=-1, keepdims=True)
        p = jnp.exp(s)
        p = p * pl.reciprocal(jnp.sum(p, axis=-1, keepdims=True), approx=True)
        ctx_heads.append(jnp.dot(p.astype(MATMUL_DTYPE), vh,
                                 preferred_element_type=jnp.float32)
                         .astype(MATMUL_DTYPE))             # (S, dh) bf16
    ctx = jnp.concatenate(ctx_heads, axis=-1)               # (S, H) bf16

    # Single fused output projection + residual + LayerNorm epilogue.
    y = (jnp.dot(ctx, wo_ref[...], preferred_element_type=jnp.float32)
         + bo_ref[...] + x.astype(jnp.float32))
    o_ref[0] = _layernorm_f32(y, g_ref[...], b_ref[...], eps).astype(o_ref.dtype)


def attention_block(x, add_mask, wqkv, bqkv, wo, bo, gamma, beta, *, n_heads, eps):
    B, S, H = x.shape
    return pl.pallas_call(
        functools.partial(_attn_block_kernel, n_heads=n_heads, eps=eps),
        out_shape=jax.ShapeDtypeStruct((B, S, H), x.dtype),
        grid=(B,),
        in_specs=[
            pl.BlockSpec((1, S, H), lambda b: (b, 0, 0)),
            pl.BlockSpec((1, 1, S), lambda b: (b, 0, 0)),
            _const_spec((H, 3 * H)),
            _const_spec((1, 3 * H)),
            _const_spec((H, H)),
            _const_spec((1, H)),
            _const_spec((1, H)),
            _const_spec((1, H)),
        ],
        out_specs=pl.BlockSpec((1, S, H), lambda b: (b, 0, 0)),
        compiler_params=pltpu.CompilerParams(
            dimension_semantics=("parallel",),
            vmem_limit_bytes=_vmem_limit_bytes()),
    )(x, add_mask, wqkv, bqkv.reshape(1, 3 * H), wo, bo.reshape(1, H),
      gamma.reshape(1, H), beta.reshape(1, H))


# -----------------------------------------------------------------------------
# Fused FFN block: FF1 + GELU + FF2 + residual + LN2 (row-tiled over B*S)
# -----------------------------------------------------------------------------
def _ffn_block_kernel(x_ref, w1_ref, b1_ref, w2_ref, b2_ref, g_ref, b_ref,
                      o_ref, *, eps):
    x = x_ref[...]                                          # (tm, H) bf16
    h = (jnp.dot(x, w1_ref[...], preferred_element_type=jnp.float32)
         + b1_ref[...])                                     # (tm, I) f32
    # TODO(synk): HF BERT uses exact erf-GELU; tanh approximation used here.
    c = math.sqrt(2.0 / math.pi)
    h = 0.5 * h * (1.0 + jnp.tanh(c * (h + 0.044715 * h * h * h)))
    y = (jnp.dot(h.astype(MATMUL_DTYPE), w2_ref[...],
                 preferred_element_type=jnp.float32) + b2_ref[...])
    y = y + x.astype(jnp.float32)                           # residual
    o_ref[...] = _layernorm_f32(y, g_ref[...], b_ref[...], eps).astype(o_ref.dtype)


def ffn_block(x, w1, b1, w2, b2, gamma, beta, *, eps):
    M, H = x.shape
    I = w1.shape[1]
    tm, pM = _row_plan(M)
    xp = x if pM == M else jnp.pad(x, ((0, pM - M), (0, 0)))
    out = pl.pallas_call(
        functools.partial(_ffn_block_kernel, eps=eps),
        out_shape=jax.ShapeDtypeStruct((pM, H), x.dtype),
        grid=(pM // tm,),
        in_specs=[
            pl.BlockSpec((tm, H), lambda i: (i, 0)),
            _const_spec((H, I)),
            _const_spec((1, I)),
            _const_spec((I, H)),
            _const_spec((1, H)),
            _const_spec((1, H)),
            _const_spec((1, H)),
        ],
        out_specs=pl.BlockSpec((tm, H), lambda i: (i, 0)),
        compiler_params=pltpu.CompilerParams(
            dimension_semantics=("parallel",),
            vmem_limit_bytes=_vmem_limit_bytes()),
    )(xp, w1, b1.reshape(1, I), w2, b2.reshape(1, H),
      gamma.reshape(1, H), beta.reshape(1, H))
    return out if pM == M else out[:M]


# -----------------------------------------------------------------------------
# Fused tail: pooler(tanh) + LayerNorm + dropout(eval=identity) + classifier
# -----------------------------------------------------------------------------
def _tail_kernel(cls_ref, wp_ref, bp_ref, g_ref, b_ref, wc_ref, bc_ref, o_ref,
                 *, eps):
    x = cls_ref[...]                                        # (B, H) bf16
    p = jnp.tanh(jnp.dot(x, wp_ref[...], preferred_element_type=jnp.float32)
                 + bp_ref[...])                             # BERT pooler (f32)
    n = _layernorm_f32(p, g_ref[...], b_ref[...], eps)
    # nn.Dropout(p=0.1) is identity at inference (eval mode) -> no-op here.
    o_ref[...] = (jnp.dot(n.astype(MATMUL_DTYPE), wc_ref[...],
                          preferred_element_type=jnp.float32) + bc_ref[...])


def pooler_head(cls, wp, bp, gamma, beta, wc, bc, *, eps):
    B, H = cls.shape
    C = wc.shape[1]
    return pl.pallas_call(
        functools.partial(_tail_kernel, eps=eps),
        out_shape=jax.ShapeDtypeStruct((B, C), jnp.float32),
        grid=(1,),
        in_specs=[
            pl.BlockSpec((B, H), lambda i: (0, 0)),
            pl.BlockSpec((H, H), lambda i: (0, 0)),
            pl.BlockSpec((1, H), lambda i: (0, 0)),
            pl.BlockSpec((1, H), lambda i: (0, 0)),
            pl.BlockSpec((1, H), lambda i: (0, 0)),
            pl.BlockSpec((H, C), lambda i: (0, 0)),
            pl.BlockSpec((1, C), lambda i: (0, 0)),
        ],
        out_specs=pl.BlockSpec((B, C), lambda i: (0, 0)),
        compiler_params=pltpu.CompilerParams(
            vmem_limit_bytes=_vmem_limit_bytes()),
    )(cls, wp, bp.reshape(1, H), gamma.reshape(1, H), beta.reshape(1, H),
      wc, bc.reshape(1, C))


# -----------------------------------------------------------------------------
# Parameters (deterministic synthetic init — not a checkpoint load)
# -----------------------------------------------------------------------------
def init_params(key, *, vocab=100, hidden=32, n_layers=2, n_heads=2, inter=64,
                max_pos=64, type_vocab=2, num_classes=3, num_categories=1):
    std = 0.02
    keys = iter(jax.random.split(key, 256))

    def w(shape):
        return jax.random.normal(next(keys), shape, jnp.float32) * std

    def zeros(shape):
        return jnp.zeros(shape, jnp.float32)

    def ones(shape):
        return jnp.ones(shape, jnp.float32)

    layers = []
    for _ in range(n_layers):
        layers.append(dict(
            wq=w((hidden, hidden)), bq=zeros((hidden,)),
            wk=w((hidden, hidden)), bk=zeros((hidden,)),
            wv=w((hidden, hidden)), bv=zeros((hidden,)),
            wo=w((hidden, hidden)), bo=zeros((hidden,)),
            ln1_g=ones((hidden,)), ln1_b=zeros((hidden,)),
            w1=w((hidden, inter)), b1=zeros((inter,)),
            w2=w((inter, hidden)), b2=zeros((hidden,)),
            ln2_g=ones((hidden,)), ln2_b=zeros((hidden,)),
        ))

    return dict(
        n_heads=n_heads,
        word_emb=w((vocab, hidden)),
        pos_emb=w((max_pos, hidden)),
        type_emb=w((type_vocab, hidden)),
        emb_ln_g=ones((hidden,)), emb_ln_b=zeros((hidden,)),
        layers=layers,
        wp=w((hidden, hidden)), bp=zeros((hidden,)),            # BERT pooler
        ln_g=ones((hidden,)), ln_b=zeros((hidden,)),            # DocBERT layer_norm
        wc=w((hidden, num_classes * num_categories)),           # classifier
        bc=zeros((num_classes * num_categories,)),
    )


def prepare_params(p):
    """Fuse QKV weights into one (H, 3H) bf16 matrix, pre-fold the 1/sqrt(dh)
    attention scale into the q columns, and cast matmul weights to bf16."""
    n_heads = p["n_heads"]
    layers = []
    for lyr in p["layers"]:
        hidden = lyr["wq"].shape[0]
        dh = hidden // n_heads
        scale = 1.0 / math.sqrt(dh)
        wq = lyr["wq"] * scale
        bq = lyr["bq"] * scale
        layers.append(dict(
            wqkv=jnp.concatenate([wq, lyr["wk"], lyr["wv"]],
                                 axis=1).astype(MATMUL_DTYPE),
            bqkv=jnp.concatenate([bq, lyr["bk"], lyr["bv"]]),
            wo=lyr["wo"].astype(MATMUL_DTYPE), bo=lyr["bo"],
            ln1_g=lyr["ln1_g"], ln1_b=lyr["ln1_b"],
            w1=lyr["w1"].astype(MATMUL_DTYPE), b1=lyr["b1"],
            w2=lyr["w2"].astype(MATMUL_DTYPE), b2=lyr["b2"],
            ln2_g=lyr["ln2_g"], ln2_b=lyr["ln2_b"],
        ))
    return dict(
        n_heads=n_heads,
        word_emb=p["word_emb"], pos_emb=p["pos_emb"], type_emb=p["type_emb"],
        emb_ln_g=p["emb_ln_g"], emb_ln_b=p["emb_ln_b"],
        layers=layers,
        wp=p["wp"].astype(MATMUL_DTYPE), bp=p["bp"],
        ln_g=p["ln_g"], ln_b=p["ln_b"],
        wc=p["wc"].astype(MATMUL_DTYPE), bc=p["bc"],
    )


# -----------------------------------------------------------------------------
# DocBERT forward
# -----------------------------------------------------------------------------
def docbert_forward(params, input_ids, attention_mask, token_type_ids):
    B, S = input_ids.shape
    H = params["word_emb"].shape[1]
    nH = params["n_heads"]

    # Embedding gathers (plain-JAX glue) + embedding LayerNorm (Pallas, -> bf16).
    x = (jnp.take(params["word_emb"], input_ids, axis=0)
         + params["pos_emb"][:S][None, :, :]
         + jnp.take(params["type_emb"], token_type_ids, axis=0))     # (B,S,H) f32
    x = layernorm(x.reshape(B * S, H), params["emb_ln_g"], params["emb_ln_b"],
                  eps=1e-12, out_dtype=MATMUL_DTYPE)                 # (B*S,H) bf16

    # BERT-style additive attention mask (B, 1, S).
    add_mask = (1.0 - attention_mask.astype(jnp.float32))[:, None, :] * -10000.0

    for lyr in params["layers"]:
        # Fused QKV + attention + Wo + residual + LN1 (one launch per batch row).
        x3 = attention_block(x.reshape(B, S, H), add_mask,
                             lyr["wqkv"], lyr["bqkv"], lyr["wo"], lyr["bo"],
                             lyr["ln1_g"], lyr["ln1_b"],
                             n_heads=nH, eps=1e-12)                  # (B,S,H) bf16
        # Fused FF1 + GELU + FF2 + residual + LN2 (row-tiled over B*S).
        x = ffn_block(x3.reshape(B * S, H), lyr["w1"], lyr["b1"],
                      lyr["w2"], lyr["b2"], lyr["ln2_g"], lyr["ln2_b"],
                      eps=1e-12)                                     # (B*S,H) bf16

    cls = x.reshape(B, S, H)[:, 0, :]                                # (B, H) CLS
    # Fused pooler(tanh) + LayerNorm + dropout(identity) + classifier.
    logits = pooler_head(cls, params["wp"], params["bp"],
                         params["ln_g"], params["ln_b"],
                         params["wc"], params["bc"], eps=1e-5)       # (B, C) f32
    return logits


# -----------------------------------------------------------------------------
if __name__ == "__main__":
    key = jax.random.PRNGKey(0)
    k_param, k_ids = jax.random.split(key)

    B, S, VOCAB = 2, 8, 100
    raw_params = init_params(k_param, vocab=VOCAB, hidden=32, n_layers=2,
                             n_heads=2, inter=64, num_classes=3, num_categories=1)
    params = prepare_params(raw_params)

    input_ids = jax.random.randint(k_ids, (B, S), 0, VOCAB, dtype=jnp.int32)
    attention_mask = jnp.array([[1, 1, 1, 1, 1, 1, 1, 1],
                                [1, 1, 1, 1, 1, 1, 0, 0]], dtype=jnp.int32)
    token_type_ids = jnp.zeros((B, S), dtype=jnp.int32)

    logits = docbert_forward(params, input_ids, attention_mask, token_type_ids)
    logits = jax.block_until_ready(logits)
    assert logits.shape == (B, 3) and logits.dtype == jnp.float32
    print("KERNEL_OK")
</pallas_src>

<mosaic_0001>
module attributes {stable_mosaic.version = 11 : i64} {
  func.func @_k(%arg0: i32, %arg1: memref<8x128xf32, #tpu.memory_space<vmem>>, %arg2: memref<8x128xf32, #tpu.memory_space<vmem>>, %arg3: memref<8x128xf32, #tpu.memory_space<vmem>>) attributes {dimension_semantics = [#tpu.dimension_semantics<arbitrary>], iteration_bounds = array<i64: 2>, scalar_prefetch = 0 : i64, scratch_operands = 0 : i64, tpu.core_type = #tpu.core_type<tc>, window_params = [{transform_indices = @transform_0, window_bounds = array<i64: 8, 128>}, {pipeline_mode = #tpu.pipeline_mode<synchronous>, transform_indices = @transform_1, window_bounds = array<i64: 8, 128>}, {transform_indices = @transform_2, window_bounds = array<i64: 8, 128>}]} {
    %c0 = arith.constant 0 : index
    %c0_0 = arith.constant 0 : index
    %0 = vector.load %arg1[%c0, %c0_0] : memref<8x128xf32, #tpu.memory_space<vmem>>, vector<8x128xf32>
    %c0_1 = arith.constant 0 : index
    %c0_2 = arith.constant 0 : index
    %1 = vector.load %arg2[%c0_1, %c0_2] : memref<8x128xf32, #tpu.memory_space<vmem>>, vector<8x128xf32>
    %2 = arith.addf %0, %1 : vector<8x128xf32>
    %c0_3 = arith.constant 0 : index
    %c0_4 = arith.constant 0 : index
    %3 = vector.load %arg3[%c0_3, %c0_4] : memref<8x128xf32, #tpu.memory_space<vmem>>, vector<8x128xf32>
    tpu.vector_store %arg3[%c0_3, %c0_4], %2 {strides = array<i32>} : memref<8x128xf32, #tpu.memory_space<vmem>>, vector<8x128xf32>,
    return
  }
  func.func @transform_0(%arg0: i32) -> (i32, i32) {
    %c0_i32 = arith.constant 0 : i32
    %c0_i32_0 = arith.constant 0 : i32
    return %arg0, %c0_i32 : i32, i32
  }
  func.func @transform_1(%arg0: i32) -> (i32, i32) {
    %c0_i32 = arith.constant 0 : i32
    %c0_i32_0 = arith.constant 0 : i32
    %c0_i32_1 = arith.constant 0 : i32
    return %c0_i32, %c0_i32_0 : i32, i32
  }
  func.func @transform_2(%arg0: i32) -> (i32, i32) {
    %c0_i32 = arith.constant 0 : i32
    %c0_i32_0 = arith.constant 0 : i32
    return %arg0, %c0_i32 : i32, i32
  }
}

module attributes {stable_mosaic.version = 11 : i64} {
  func.func @_layernorm_kernel(%arg0: i32, %arg1: memref<16x32xf32, #tpu.memory_space<vmem>>, %arg2: memref<1x32xf32, #tpu.memory_space<vmem>>, %arg3: memref<1x32xf32, #tpu.memory_space<vmem>>, %arg4: memref<16x32xbf16, #tpu.memory_space<vmem>>) attributes {dimension_semantics = [#tpu.dimension_semantics<parallel>], iteration_bounds = array<i64: 1>, scalar_prefetch = 0 : i64, scratch_operands = 0 : i64, tpu.core_type = #tpu.core_type<tc>, window_params = [{transform_indices = @transform_0, window_bounds = array<i64: 16, 32>}, {pipeline_mode = #tpu.pipeline_mode<synchronous>, transform_indices = @transform_1, window_bounds = array<i64: 1, 32>}, {pipeline_mode = #tpu.pipeline_mode<synchronous>, transform_indices = @transform_2, window_bounds = array<i64: 1, 32>}, {transform_indices = @transform_3, window_bounds = array<i64: 16, 32>}]} {
    %c0 = arith.constant 0 : index
    %c0_0 = arith.constant 0 : index
    %0 = vector.load %arg1[%c0, %c0_0] : memref<16x32xf32, #tpu.memory_space<vmem>>, vector<16x32xf32>
    %c0_1 = arith.constant 0 : index
    %c0_2 = arith.constant 0 : index
    %1 = vector.load %arg2[%c0_1, %c0_2] : memref<1x32xf32, #tpu.memory_space<vmem>>, vector<1x32xf32>
    %c0_3 = arith.constant 0 : index
    %c0_4 = arith.constant 0 : index
    %2 = vector.load %arg3[%c0_3, %c0_4] : memref<1x32xf32, #tpu.memory_space<vmem>>, vector<1x32xf32>
    %cst = arith.constant dense<0.000000e+00> : vector<16xf32>
    %3 = vector.multi_reduction <add>, %0, %cst [1] : vector<16x32xf32> to vector<16xf32>
    %4 = vector.shape_cast %3 : vector<16xf32> to vector<16x1xf32>
    %cst_5 = arith.constant 3.200000e+01 : f32
    %5 = vector.broadcast %cst_5 : f32 to vector<16x1xf32>
    %6 = arith.divf %4, %5 : vector<16x1xf32>
    %7 = arith.mulf %0, %0 : vector<16x32xf32>
    %cst_6 = arith.constant dense<0.000000e+00> : vector<16xf32>
    %8 = vector.multi_reduction <add>, %7, %cst_6 [1] : vector<16x32xf32> to vector<16xf32>
    %9 = vector.shape_cast %8 : vector<16xf32> to vector<16x1xf32>
    %cst_7 = arith.constant 3.200000e+01 : f32
    %10 = vector.broadcast %cst_7 : f32 to vector<16x1xf32>
    %11 = arith.divf %9, %10 : vector<16x1xf32>
    %12 = arith.mulf %6, %6 : vector<16x1xf32>
    %13 = arith.subf %11, %12 : vector<16x1xf32>
    %cst_8 = arith.constant 0.000000e+00 : f32
    %14 = vector.broadcast %cst_8 : f32 to vector<16x1xf32>
    %15 = arith.maximumf %13, %14 : vector<16x1xf32>
    %16 = vector.broadcast %6 : vector<16x1xf32> to vector<16x32xf32>
    %17 = arith.subf %0, %16 : vector<16x32xf32>
    %cst_9 = arith.constant 9.99999996E-13 : f32
    %18 = vector.broadcast %cst_9 : f32 to vector<16x1xf32>
    %19 = arith.addf %15, %18 : vector<16x1xf32>
    %20 = math.rsqrt %19 : vector<16x1xf32>
    %21 = vector.broadcast %20 : vector<16x1xf32> to vector<16x32xf32>
    %22 = arith.mulf %17, %21 : vector<16x32xf32>
    %23 = vector.broadcast %1 : vector<1x32xf32> to vector<16x32xf32>
    %24 = arith.mulf %22, %23 : vector<16x32xf32>
    %25 = vector.broadcast %2 : vector<1x32xf32> to vector<16x32xf32>
    %26 = arith.addf %24, %25 : vector<16x32xf32>
    %27 = arith.truncf %26 : vector<16x32xf32> to vector<16x32xbf16>
    %c0_10 = arith.constant 0 : index
    %c0_11 = arith.constant 0 : index
    %28 = vector.load %arg4[%c0_10, %c0_11] : memref<16x32xbf16, #tpu.memory_space<vmem>>, vector<16x32xbf16>
    tpu.vector_store %arg4[%c0_10, %c0_11], %27 {strides = array<i32>} : memref<16x32xbf16, #tpu.memory_space<vmem>>, vector<16x32xbf16>,
    return
  }
  func.func @transform_0(%arg0: i32) -> (i32, i32) {
    %c0_i32 = arith.constant 0 : i32
    %c0_i32_0 = arith.constant 0 : i32
    return %arg0, %c0_i32 : i32, i32
  }
  func.func @transform_1(%arg0: i32) -> (i32, i32) {
    %c0_i32 = arith.constant 0 : i32
    %c0_i32_0 = arith.constant 0 : i32
    %c0_i32_1 = arith.constant 0 : i32
    return %c0_i32, %c0_i32_0 : i32, i32
  }
  func.func @transform_2(%arg0: i32) -> (i32, i32) {
    %c0_i32 = arith.constant 0 : i32
    %c0_i32_0 = arith.constant 0 : i32
    %c0_i32_1 = arith.constant 0 : i32
    return %c0_i32, %c0_i32_0 : i32, i32
  }
  func.func @transform_3(%arg0: i32) -> (i32, i32) {
    %c0_i32 = arith.constant 0 : i32
    %c0_i32_0 = arith.constant 0 : i32
    return %arg0, %c0_i32 : i32, i32
  }
}

</mosaic_0001>

<llo_original>
// kernel: tpu_custom_call.1
$region0: #{tpu_custom_call.1}
  #allocation0 [shape = 'u32[]', space=smem, size = 0x4, offset = 0x4, fixed_abs, tag = 'smem constant byte address 0x4 - core index']
  #allocation1 [shape = 'u32[144,128]{1,0:T(1,128)}', space=vmem, size = 0x12000, scoped, tag = 'internal scratch']
  %s0 = inlined_call_operand.hbm [shape: f32[16,128], index: 0, kind: input, shape index: {}]
  %s1 = inlined_call_operand.hbm [shape: f32[8,128], index: 1, kind: input, shape index: {}]
  %s2 = inlined_call_operand.hbm [shape: f32[16,128], index: 2, kind: output, shape index: {}]
  %s3 = sld [smem:[#allocation0]]
  $region49: #{tpu_custom_call.1} parent=0
    _
  %s5 = ssub.s32 1, %s3
  %s6 = scalar_select 0, %s5, %s3
  $region1: #{tpu_custom_call.1} parent=0
    #allocation2 [shape = 'u8[8192]{0}', space=vmem, size = 0x2000, scoped, tag = 'input window, operand 0']
    #allocation3 [shape = 's32[2]{0}', space=sflag, size = 0x8, scoped, tag = 'scoped memory for tpu_custom_call.1']
    #allocation4 [shape = 's32[2]{0}', space=sflag, size = 0x8, scoped, tag = 'scoped memory for tpu_custom_call.1']
    #allocation5 [shape = 'u8[4096]{0}', space=vmem, size = 0x1000, scoped, tag = 'input window, operand 1, single buffered']
    #allocation6 [shape = 's32[1]{0}', space=sflag, size = 0x4, scoped, tag = 'scoped memory for tpu_custom_call.1']
    #allocation7 [shape = 'u8[8192]{0}', space=vmem, size = 0x2000, scoped, tag = 'output window, operand 0']
    %7 = vsyncpa [#allocation3], 0
    %s8 = scalar_lea.sflag [#allocation3], 1
    %9 = vsyncpa %s8, 0
    %10 = vsyncpa [#allocation6], 0
    %11 = vsyncpa [#allocation4], 0
    %s12 = scalar_lea.sflag [#allocation4], 1
    %13 = vsyncpa %s12, 0
    loop: start=0, step=1, limit=4
    $region2: #{tpu_custom_call.1} parent=1 // loop_pre_header
      _
    $region3: #{tpu_custom_call.1} parent=1 // loop_header
      %s15 = sphi 0, %s19
      %p16 = scmp.ge.s32.totalorder %s15, 4
      %s25 = sphi 0, %s27
      %s28 = sphi 0, %s25
      %s29 = sphi 0, %s28
      %s45 = sphi 0, %s29
      %s49 = sphi 0, %s49
      %s51 = sphi 0, %s49
      %s52 = sphi 0, %s51
      %s66 = sphi 0, %s52
      %s72 = sphi 0, %s74
      %s75 = sphi 0, %s72
      %s76 = sphi 0, %s75
      %s92 = sphi 0, %s76
    $region4: #{tpu_custom_call.1} parent=1 // loop_header_branch
      %18 = sbr.rel (%p16) target = $region8
    $region5: #{tpu_custom_call.1} parent=1 // loop_body
      %s20 = ssub.s32 %s15, 1
      %s21 = ssub.s32 %s15, 2
      %s22 = sadd.s32 %s15, 1
      %s23 = ssub.s32 %s15, %s22
      %p24 = scmp.eq.s32.totalorder %s23, 0
      %s26 = sadd.s32 %s25, 1
      %s27 = scalar_select %p24, %s25, %s26
      %p30 = pneg %p24
      %p31 = scmp.eq.s32.totalorder %s15, 1
      %p32 = por %p30, %p31
      %p33 = scmp.ne.s32.totalorder %s25, %s28
      %p34 = scmp.eq.s32.totalorder %s15, 0
      %p35 = por %p33, %p34
      %p36 = scmp.ne.s32.totalorder %s25, %s28
      %p37 = scmp.eq.s32.totalorder %s20, 1
      %p38 = por %p36, %p37
      %p39 = scmp.ne.s32.totalorder %s28, %s29
      %p40 = scmp.eq.s32.totalorder %s20, 0
      %p41 = por %p39, %p40
      %p42 = scmp.ne.s32.totalorder %s28, %s29
      %p43 = scmp.eq.s32.totalorder %s21, 1
      %p44 = por %p42, %p43
      %p46 = scmp.ne.s32.totalorder %s29, %s45
      %p47 = scmp.eq.s32.totalorder %s21, 0
      %p48 = por %p46, %p47
      %s50 = sadd.s32 %s49, 1
      %p53 = scmp.eq.s32.totalorder %s15, 1
      %p54 = scmp.ne.s32.totalorder %s49, %s51
      %p55 = scmp.eq.s32.totalorder %s15, 0
      %p56 = por %p54, %p55
      %p57 = scmp.ne.s32.totalorder %s49, %s51
      %p58 = scmp.eq.s32.totalorder %s20, 1
      %p59 = por %p57, %p58
      %p60 = scmp.ne.s32.totalorder %s51, %s52
      %p61 = scmp.eq.s32.totalorder %s20, 0
      %p62 = por %p60, %p61
      %p63 = scmp.ne.s32.totalorder %s51, %s52
      %p64 = scmp.eq.s32.totalorder %s21, 1
      %p65 = por %p63, %p64
      %p67 = scmp.ne.s32.totalorder %s52, %s66
      %p68 = scmp.eq.s32.totalorder %s21, 0
      %p69 = por %p67, %p68
      %s70 = ssub.s32 %s15, %s22
      %p71 = scmp.eq.s32.totalorder %s70, 0
      %s73 = sadd.s32 %s72, 1
      %s74 = scalar_select %p71, %s72, %s73
      %p77 = pneg %p71
      %p78 = scmp.eq.s32.totalorder %s15, 1
      %p79 = por %p77, %p78
      %p80 = scmp.ne.s32.totalorder %s72, %s75
      %p81 = scmp.eq.s32.totalorder %s15, 0
      %p82 = por %p80, %p81
      %p83 = scmp.ne.s32.totalorder %s72, %s75
      %p84 = scmp.eq.s32.totalorder %s20, 1
      %p85 = por %p83, %p84
      %p86 = scmp.ne.s32.totalorder %s75, %s76
      %p87 = scmp.eq.s32.totalorder %s20, 0
      %p88 = por %p86, %p87
      %p89 = scmp.ne.s32.totalorder %s75, %s76
      %p90 = scmp.eq.s32.totalorder %s21, 1
      %p91 = por %p89, %p90
      %p93 = scmp.ne.s32.totalorder %s76, %s92
      %p94 = scmp.eq.s32.totalorder %s21, 0
      %p95 = por %p93, %p94
      %p96 = scmp.le.s32.totalorder 1, %s15
      %p97 = scmp.lt.s32.totalorder %s15, 3
      %p98 = pnand %p96, %p97
      %p99 = pneg %p98
      // Predicated region
      $region9: #{tpu_custom_call.1} parent=5 // pred_check
        _
      $region10: #{tpu_custom_call.1} parent=5 // pred_check_branch
        %101 = sbr.rel (%p98) target = $region12
      $region11: #{tpu_custom_call.1} parent=5 // pred_region
        %s102 = ssub.s32 %s15, 1
        // Predicated region
        $region13: #{tpu_custom_call.1} parent=11 // pred_check
          %p103 = pneg %p62
        $region14: #{tpu_custom_call.1} parent=11 // pred_check_branch
          %105 = sbr.rel (%p103) target = $region16
        $region15: #{tpu_custom_call.1} parent=11 // pred_region
          %s107 = ssub.s32 128, 128
          %108 = vsyncadd [#allocation6], %s107
          %s110 = sshll.u32 [#allocation5], 4
          %s111 = int_to_ptr.vmem [resolvable:$true] %s110
          %113 = dma.hbm_to_vmem [thread:$0]  %s1, 128, %s111, [#allocation6]
        $region16: #{tpu_custom_call.1} parent=11 // pred_fallthru
          _
      $region12: #{tpu_custom_call.1} parent=5 // pred_fallthru
        _
      %p114 = scmp.lt.s32.totalorder %s15, 2
      // Predicated region
      $region17: #{tpu_custom_call.1} parent=5 // pred_check
        %p115 = pneg %p114
      $region18: #{tpu_custom_call.1} parent=5 // pred_check_branch
        %117 = sbr.rel (%p115) target = $region20
      $region19: #{tpu_custom_call.1} parent=5 // pred_region
        // Predicated region
        $region21: #{tpu_custom_call.1} parent=19 // pred_check
          %p118 = pneg %p35
        $region22: #{tpu_custom_call.1} parent=19 // pred_check_branch
          %120 = sbr.rel (%p118) target = $region24
        $region23: #{tpu_custom_call.1} parent=19 // pred_region
          %s121 = sand.u32 %s25, 1
          %s122 = scalar_lea.sflag [#allocation3], %s121
          %s123 = sand.u32 %s25, 1
          %s124 = smul.addr %s123, 8
          %s125 = scalar_lea.vmem [#allocation2], %s124
          %s127 = ssub.s32 128, 128
          %128 = vsyncadd %s122, %s127
          %s129 = smul.addr %s15, 128
          %s130 = scalar_lea.hbm %s0, %s129
          %s132 = sshll.u32 %s125, 4
          %s133 = int_to_ptr.vmem [resolvable:$true] %s132
          %135 = dma.hbm_to_vmem [thread:$0]  %s130, 128, %s133, %s122
        $region24: #{tpu_custom_call.1} parent=19 // pred_fallthru
          _
      $region20: #{tpu_custom_call.1} parent=5 // pred_fallthru
        _
      %p136 = scmp.le.s32.totalorder 1, %s15
      %p137 = scmp.lt.s32.totalorder %s15, 3
      %p138 = pnand %p136, %p137
      %p139 = pneg %p138
      // Predicated region
      $region25: #{tpu_custom_call.1} parent=5 // pred_check
        _
      $region26: #{tpu_custom_call.1} parent=5 // pred_check_branch
        %141 = sbr.rel (%p138) target = $region28
      $region27: #{tpu_custom_call.1} parent=5 // pred_region
        %s142 = ssub.s32 %s15, 1
        %s143 = sand.u32 %s28, 1
        %s144 = scalar_lea.sflag [#allocation3], %s143
        %s145 = sand.u32 %s28, 1
        %s146 = smul.addr %s145, 8
        %s147 = scalar_lea.vmem [#allocation2], %s146
        // Predicated region
        $region29: #{tpu_custom_call.1} parent=27 // pred_check
          %p148 = pneg %p41
        $region30: #{tpu_custom_call.1} parent=27 // pred_check_branch
          %150 = sbr.rel (%p148) target = $region32
        $region31: #{tpu_custom_call.1} parent=27 // pred_region
          %151 = dma.done %s144, 128
        $region32: #{tpu_custom_call.1} parent=27 // pred_fallthru
          _
        // Predicated region
        $region33: #{tpu_custom_call.1} parent=27 // pred_check
          %p152 = pneg %p62
        $region34: #{tpu_custom_call.1} parent=27 // pred_check_branch
          %154 = sbr.rel (%p152) target = $region36
        $region35: #{tpu_custom_call.1} parent=27 // pred_region
          %155 = dma.done [#allocation6], 128
        $region36: #{tpu_custom_call.1} parent=27 // pred_fallthru
          _
        %s156 = sand.u32 %s28, 1
        %s157 = scalar_lea.sflag [#allocation3], %s156
        %s158 = sand.u32 %s28, 1
        %s159 = smul.addr %s158, 8
        %s160 = scalar_lea.vmem [#allocation2], %s159
        %p161 = pneg %p41
        %p162 = pneg %p38
        %p163 = pneg %p62
        %p164 = pneg %p59
        %p165 = pneg %p88
        %p166 = pneg %p85
        %s167 = sand.u32 %s75, 1
        %s168 = scalar_lea.sflag [#allocation4], %s167
        %s169 = sand.u32 %s75, 1
        %s170 = smul.addr %s169, 8
        %s171 = scalar_lea.vmem [#allocation7], %s170
        %v172 = vld [vmem:[%s147] sm:$0xff]
        %v173 = vld [vmem:[#allocation5] sm:$0xff]
        %v174 = vadd.f32 %v172, %v173
        %175 = vst [vmem:[%s171] sm:$0xff] %v174
        %s176 = sand.u32 %s75, 1
        %s177 = scalar_lea.sflag [#allocation4], %s176
        %s178 = sand.u32 %s75, 1
        %s179 = smul.addr %s178, 8
        %s180 = scalar_lea.vmem [#allocation7], %s179
        // Predicated region
        $region37: #{tpu_custom_call.1} parent=27 // pred_check
          %p181 = pneg %p85
        $region38: #{tpu_custom_call.1} parent=27 // pred_check_branch
          %183 = sbr.rel (%p181) target = $region40
        $region39: #{tpu_custom_call.1} parent=27 // pred_region
          %s185 = ssub.s32 128, 128
          %186 = vsyncadd %s177, %s185
          %s187 = smul.addr %s20, 128
          %s188 = scalar_lea.hbm %s2, %s187
          %s190 = sshll.u32 %s180, 4
          %s191 = int_to_ptr.vmem [resolvable:$true] %s190
          %193 = dma.vmem_to_hbm [thread:$0]  %s191, 128, %s188, %s177
        $region40: #{tpu_custom_call.1} parent=27 // pred_fallthru
          _
      $region28: #{tpu_custom_call.1} parent=5 // pred_fallthru
        _
      %p194 = scmp.le.s32.totalorder 2, %s15
      // Predicated region
      $region41: #{tpu_custom_call.1} parent=5 // pred_check
        %p195 = pneg %p194
      $region42: #{tpu_custom_call.1} parent=5 // pred_check_branch
        %197 = sbr.rel (%p195) target = $region44
      $region43: #{tpu_custom_call.1} parent=5 // pred_region
        %s198 = ssub.s32 %s15, 2
        // Predicated region
        $region45: #{tpu_custom_call.1} parent=43 // pred_check
          %p199 = pneg %p91
        $region46: #{tpu_custom_call.1} parent=43 // pred_check_branch
          %201 = sbr.rel (%p199) target = $region48
        $region47: #{tpu_custom_call.1} parent=43 // pred_region
          %s202 = sand.u32 %s76, 1
          %s203 = scalar_lea.sflag [#allocation4], %s202
          %s204 = sand.u32 %s76, 1
          %s205 = smul.addr %s204, 8
          %s206 = scalar_lea.vmem [#allocation7], %s205
          %207 = dma.done %s203, 128
        $region48: #{tpu_custom_call.1} parent=43 // pred_fallthru
          _
      $region44: #{tpu_custom_call.1} parent=5 // pred_fallthru
        _
    $region6: #{tpu_custom_call.1} parent=1 // loop_footer
      %s19 = sadd.s32 1, %s15
    $region7: #{tpu_custom_call.1} parent=1 // loop_footer_branch
      %14 = sbr.rel target = $region3
    $region8: #{tpu_custom_call.1} parent=1 // loop_exit
      _
    %208 = vsyncpa [#allocation3], 1
    %s209 = scalar_lea.sflag [#allocation3], 1
    %210 = vsyncpa %s209, 1
    %211 = vsyncpa [#allocation6], 1
    %212 = vsyncpa [#allocation4], 1
    %s213 = scalar_lea.sflag [#allocation4], 1
    %214 = vsyncpa %s213, 1

// kernel: tpu_custom_call.1
$region0: #{tpu_custom_call.1}
  #allocation0 [shape = 'u32[]', space=smem, size = 0x4, offset = 0x4, fixed_abs, tag = 'smem constant byte address 0x4 - core index']
  #allocation1 [shape = 'u32[144,128]{1,0:T(1,128)}', space=vmem, size = 0x12000, scoped, tag = 'internal scratch']
  %s0 = inlined_call_operand.hbm [shape: f32[16,32], index: 0, kind: input, shape index: {}]
  %s1 = inlined_call_operand.vmem [shape: f32[1,32], index: 1, kind: input, shape index: {}]
  %s2 = inlined_call_operand.vmem [shape: f32[1,32], index: 2, kind: input, shape index: {}]
  %s3 = inlined_call_operand.hbm [shape: bf16[16,32], index: 3, kind: output, shape index: {}]
  %s4 = sld [smem:[#allocation0]]
  $region26: #{tpu_custom_call.1} parent=0
    _
  %s6 = ssub.s32 1, %s4
  %s7 = scalar_select 0, %s6, %s4
  $region1: #{tpu_custom_call.1} parent=0
    #allocation2 [shape = 'u8[8192]{0}', space=vmem, size = 0x2000, scoped, tag = 'input window, operand 0, single buffered']
    #allocation3 [shape = 's32[1]{0}', space=sflag, size = 0x4, scoped, tag = 'scoped memory for tpu_custom_call.1']
    #allocation4 [shape = 's32[1]{0}', space=sflag, size = 0x4, scoped, tag = 'scoped memory for tpu_custom_call.1']
    #allocation5 [shape = 'u8[4096]{0}', space=vmem, size = 0x1000, scoped, tag = 'output window, operand 0, single buffered']
    %8 = vsyncpa [#allocation3], 0
    %9 = vsyncpa [#allocation4], 0
    // Predicated region
    $region2: #{tpu_custom_call.1} parent=1 // pred_check
      _
    $region3: #{tpu_custom_call.1} parent=1 // pred_check_branch
      %11 = sbr.rel (0) target = $region5
    $region4: #{tpu_custom_call.1} parent=1 // pred_region
      %s13 = ssub.s32 256, 256
      %14 = vsyncadd [#allocation3], %s13
      %s15 = sshll.u32 [#allocation2], 4
      %s16 = int_to_ptr.vmem [resolvable:$true] %s15
      %21 = dma.hbm_to_vmem [thread:$0]  %s0, 256, %s16, [#allocation3], 128, 128, 8
    $region5: #{tpu_custom_call.1} parent=1 // pred_fallthru
      _
    // Predicated region
    $region6: #{tpu_custom_call.1} parent=1 // pred_check
      _
    $region7: #{tpu_custom_call.1} parent=1 // pred_check_branch
      %23 = sbr.rel (0) target = $region9
    $region8: #{tpu_custom_call.1} parent=1 // pred_region
      _
    $region9: #{tpu_custom_call.1} parent=1 // pred_fallthru
      _
    // Predicated region
    $region10: #{tpu_custom_call.1} parent=1 // pred_check
      _
    $region11: #{tpu_custom_call.1} parent=1 // pred_check_branch
      %25 = sbr.rel (0) target = $region13
    $region12: #{tpu_custom_call.1} parent=1 // pred_region
      _
    $region13: #{tpu_custom_call.1} parent=1 // pred_fallthru
      _
    // Predicated region
    $region14: #{tpu_custom_call.1} parent=1 // pred_check
      _
    $region15: #{tpu_custom_call.1} parent=1 // pred_check_branch
      %27 = sbr.rel (0) target = $region17
    $region16: #{tpu_custom_call.1} parent=1 // pred_region
      %28 = dma.done [#allocation3], 256
    $region17: #{tpu_custom_call.1} parent=1 // pred_fallthru
      _
    %v29 = vld [vmem:[#allocation2] sm:$0xff]
    %v30 = vld [vmem:[#allocation2 + $0x8] sm:$0xff]
    %v31 = vld [vmem:[%s1] sm:$0x1]
    %v32 = vld [vmem:[%s2] sm:$0x1]
    %vm33 = vcmask 261120
    %v34 = vsel %vm33, %v29, 0.0
    %35 = vadd.xlane.f32.xlu0 %v34
    %v36 = vpop.xlane.xlu0 %35
    %v37 = vsel %vm33, %v30, 0.0
    %38 = vadd.xlane.f32.xlu0 %v37
    %v39 = vpop.xlane.xlu0 %38
    %v40 = vrcp.pop 32.0
    %v41 = vmul.f32 %v36, %v40
    %v42 = vmul.f32 %v39, %v40
    %v43 = vmul.f32 %v29, %v29
    %v44 = vmul.f32 %v30, %v30
    %v45 = vsel %vm33, %v43, 0.0
    %46 = vadd.xlane.f32.xlu0 %v45
    %v47 = vpop.xlane.xlu0 %46
    %v48 = vsel %vm33, %v44, 0.0
    %49 = vadd.xlane.f32.xlu0 %v48
    %v50 = vpop.xlane.xlu0 %49
    %v51 = vmul.f32 %v47, %v40
    %v52 = vmul.f32 %v50, %v40
    %v53 = vmul.f32 %v41, %v41
    %v54 = vmul.f32 %v42, %v42
    %v55 = vsub.f32 %v51, %v53
    %v56 = vsub.f32 %v52, %v54
    %v57 = vmax.f32 %v55, 0.0
    %v58 = vmax.f32 %v56, 0.0
    %v59 = vsub.f32 %v29, %v41
    %v60 = vsub.f32 %v30, %v42
    %v61 = vadd.f32 %v57, 1e-12
    %v62 = vadd.f32 %v58, 1e-12
    %v63 = vrsqrt.pop %v61
    %v64 = vrsqrt.pop %v62
    %v65 = vmul.f32 %v59, %v63
    %v66 = vmul.f32 %v60, %v64
    %v68 = vlaneseq
    %v69 = vshrl.u32 %v68, 7
    %v70 = vsub.s32 0, %v69
    %v71 = vrot.slane %v31, %v70
    %v73 = vmul.f32 %v65, %v71
    %v74 = vmul.f32 %v66, %v71
    %v76 = vlaneseq
    %v77 = vshrl.u32 %v76, 7
    %v78 = vsub.s32 0, %v77
    %v79 = vrot.slane %v32, %v78
    %v81 = vadd.f32 %v73, %v79
    %v82 = vadd.f32 %v74, %v79
    %v83 = vpack.c.bf16 %v82, %v81
    %v85 = vunpack.c.l.b16 %v83
    %v86 = vunpack.c.h.b16 %v83
    %v87 = vpack.c.b16 %v85, %v85
    %v88 = vpack.c.b16 %v86, %v86
    %vm91 = vcmask 257024
    %92 = vst.msk [vmem:[#allocation5] sm:$0xf] %vm91, %v87
    %93 = vst.msk [vmem:[#allocation5 + $0x4] sm:$0xf] %vm91, %v88
    // Predicated region
    $region18: #{tpu_custom_call.1} parent=1 // pred_check
      _
    $region19: #{tpu_custom_call.1} parent=1 // pred_check_branch
      %95 = sbr.rel (0) target = $region21
    $region20: #{tpu_custom_call.1} parent=1 // pred_region
      %s97 = ssub.s32 128, 128
      %98 = vsyncadd [#allocation4], %s97
      %s99 = sshll.u32 [#allocation5], 4
      %s100 = int_to_ptr.vmem [resolvable:$true] %s99
      %105 = dma.vmem_to_hbm [thread:$0]  %s100, 128, %s3, [#allocation4], 64, 64, 4
    $region21: #{tpu_custom_call.1} parent=1 // pred_fallthru
      _
    // Predicated region
    $region22: #{tpu_custom_call.1} parent=1 // pred_check
      _
    $region23: #{tpu_custom_call.1} parent=1 // pred_check_branch
      %107 = sbr.rel (0) target = $region25
    $region24: #{tpu_custom_call.1} parent=1 // pred_region
      %108 = dma.done [#allocation4], 128
    $region25: #{tpu_custom_call.1} parent=1 // pred_fallthru
      _
    %109 = vsyncpa [#allocation3], 1
    %110 = vsyncpa [#allocation4], 1

</llo_original>
